<compile_context>
chip_gen: v7x
topology: tpu7x:2x2x1
jax: 0.10.0
libtpu: 0.0.40
codegen_flags: <defaults>
</compile_context>

<pallas_src>
import functools
import numpy as np
import jax
import jax.numpy as jnp
from jax.experimental import pallas as pl
from jax.experimental.pallas import tpu as pltpu


def _round_up(x, m):
    return ((x + m - 1) // m) * m


# ---------------------------------------------------------------------------
# Parameter construction (deterministic, mirrors MelSpec.__init__ semantics)
# ---------------------------------------------------------------------------
def _hz_to_mel(f):
    # HTK mel scale (torchaudio default mel_scale="htk")
    return 2595.0 * np.log10(1.0 + np.asarray(f, dtype=np.float64) / 700.0)


def _mel_to_hz(m):
    return 700.0 * (10.0 ** (np.asarray(m, dtype=np.float64) / 2595.0) - 1.0)


def make_mel_filterbank(n_freqs, n_mels, sample_rate, f_min, f_max):
    """torchaudio.functional.melscale_fbanks (norm=None, htk). Shape (n_freqs, n_mels)."""
    all_freqs = np.linspace(0.0, sample_rate / 2.0, n_freqs)
    m_min = _hz_to_mel(f_min)
    m_max = _hz_to_mel(f_max)
    m_pts = np.linspace(m_min, m_max, n_mels + 2)
    f_pts = _mel_to_hz(m_pts)                       # (n_mels + 2,)
    f_diff = f_pts[1:] - f_pts[:-1]                 # (n_mels + 1,)
    slopes = f_pts[None, :] - all_freqs[:, None]    # (n_freqs, n_mels + 2)
    down = -slopes[:, :-2] / f_diff[:-1]            # (n_freqs, n_mels)
    up = slopes[:, 2:] / f_diff[1:]                 # (n_freqs, n_mels)
    fb = np.maximum(0.0, np.minimum(down, up))
    return fb.astype(np.float32)


def make_dft_basis(n_fft):
    """Real/imag DFT basis for one-sided STFT with rectangular (ones) window."""
    n_freqs = n_fft // 2 + 1
    n = np.arange(n_fft, dtype=np.float64)[:, None]
    k = np.arange(n_freqs, dtype=np.float64)[None, :]
    ang = 2.0 * np.pi * n * k / float(n_fft)
    return np.cos(ang), np.sin(ang)


def make_padded_operands(n_fft, n_mels, sample_rate, f_min, f_max):
    """Lane-dense operands.

    basis (n_fft, 2*K_pad): [cos | sin], frequency columns zero-padded 129->K_pad.
    fb    (K_pad, M_pad)  : mel filterbank, zero rows/cols for the padding.
    The zero padding contributes exactly 0 to the mel output, so numerics are
    unchanged while every tile stays a full multiple of (8, 128).
    """
    n_freqs = n_fft // 2 + 1
    k_pad = _round_up(n_freqs, 128)
    m_pad = _round_up(n_mels, 128)

    cos_b, sin_b = make_dft_basis(n_fft)
    basis = np.zeros((n_fft, 2 * k_pad), dtype=np.float32)
    basis[:, :n_freqs] = cos_b
    basis[:, k_pad:k_pad + n_freqs] = sin_b

    fb = np.zeros((k_pad, m_pad), dtype=np.float32)
    fb[:n_freqs, :n_mels] = make_mel_filterbank(
        n_freqs, n_mels, sample_rate, f_min, f_max)
    return basis, fb, k_pad, m_pad


# ---------------------------------------------------------------------------
# Pallas kernel: per (batch, time-tile)   frames @ [cos|sin] -> |.| -> @ mel_fb
# ---------------------------------------------------------------------------
def _melspec_kernel(frames_ref, basis_ref, fb_ref, out_ref, *, power, k_pad):
    f = frames_ref[...]                                                   # (tT, N) bf16
    # one fused MXU pass for real and imaginary parts
    reim = jnp.dot(f, basis_ref[...], preferred_element_type=jnp.float32)  # (tT, 2*K_pad)
    re = reim[:, :k_pad]                                                   # lane-aligned static slices
    im = reim[:, k_pad:]
    pspec = re * re + im * im        # amp(stft); sign of imag part irrelevant
    if power == 2:
        spec = pspec
    elif power == 1:
        spec = jnp.sqrt(pspec)
    else:
        raise ValueError("power must be 1 or 2")
    out_ref[...] = jnp.dot(spec, fb_ref[...], preferred_element_type=jnp.float32)  # (tT, M_pad)


def mel_spec(audio, *, n_fft=256, hop_length=128, n_mels=32, sample_rate=16000,
             power=1, f_min=40.0, f_max=7600.0, pad_end=True, center=False,
             time_tile=256):
    """Equivalent of MelSpec.forward. audio: (B, L) float32 -> (B, n_mels, T)."""
    assert not center, "center=False only (matches the module default)"
    audio = jnp.asarray(audio, jnp.float32)
    B, L = audio.shape

    # pad_end (same formula as the PyTorch module)
    if pad_end:
        remainder = (L - n_fft) % hop_length
        pad = 0 if remainder == 0 else hop_length - remainder
    else:
        pad = 0
    L_eff = L + pad
    n_frames = (L_eff - n_fft) // hop_length + 1
    n_freqs = n_fft // 2 + 1

    # Time tile: multiple of 8, capped so VMEM stays small (safe for v7x 64 MiB).
    tT = max(8, min(int(time_tile), _round_up(n_frames, 8)))
    t_pad = _round_up(n_frames, tT)

    # Pad audio with zeros so t_pad frames can be gathered; extra frames are
    # all-zero -> zero mel rows -> sliced away below. This also covers pad_end.
    l_need = (t_pad - 1) * hop_length + n_fft
    audio = jnp.pad(audio, ((0, 0), (0, max(0, l_need - L))))

    # Framing (glue, plain JAX gather): frames[b, t, n] = audio[b, t*hop + n]
    idx = (np.arange(t_pad)[:, None] * hop_length
           + np.arange(n_fft)[None, :])                     # (t_pad, N)
    frames = audio[:, idx].astype(jnp.bfloat16)             # (B, t_pad, N) bf16

    basis_np, fb_np, k_pad, m_pad = make_padded_operands(
        n_fft, n_mels, sample_rate, f_min, f_max)
    basis = jnp.asarray(basis_np, jnp.bfloat16)              # (N, 2*K_pad) bf16
    fb = jnp.asarray(fb_np, jnp.float32)                     # (K_pad, M_pad) f32

    N = n_fft
    grid = (B, pl.cdiv(t_pad, tT))

    flops = B * t_pad * (2 * N * (2 * k_pad) + 3 * k_pad + 2 * k_pad * m_pad)
    transcendentals = B * t_pad * k_pad if power == 1 else 0
    bytes_accessed = (B * t_pad * N * 2            # frames (bf16)
                      + N * 2 * k_pad * 2          # basis  (bf16)
                      + k_pad * m_pad * 4          # fb     (f32)
                      + B * t_pad * m_pad * 4)     # output (f32)

    kernel = functools.partial(_melspec_kernel, power=power, k_pad=k_pad)

    out = pl.pallas_call(
        kernel,
        out_shape=jax.ShapeDtypeStruct((B, t_pad, m_pad), jnp.float32),
        grid_spec=pltpu.PrefetchScalarGridSpec(
            num_scalar_prefetch=0,
            grid=grid,
            in_specs=[
                # frames: (batch squeezed, time tile, full n_fft)
                pl.BlockSpec((pl.Squeezed(), tT, N), lambda b, t: (b, t, 0)),
                # fused DFT basis and mel filterbank stay resident (constant maps)
                pl.BlockSpec((N, 2 * k_pad), lambda b, t: (0, 0)),
                pl.BlockSpec((k_pad, m_pad), lambda b, t: (0, 0)),
            ],
            out_specs=pl.BlockSpec((pl.Squeezed(), tT, m_pad),
                                   lambda b, t: (b, t, 0)),
        ),
        compiler_params=pltpu.CompilerParams(
            dimension_semantics=("parallel", "parallel")),
        cost_estimate=pl.CostEstimate(
            flops=int(flops),
            transcendentals=int(transcendentals),
            bytes_accessed=int(bytes_accessed)),
    )(frames, basis, fb)

    # (B, t_pad, M_pad) -> slice away padding -> (B, n_mels, T)
    return jnp.transpose(out[:, :n_frames, :n_mels], (0, 2, 1))


# ---------------------------------------------------------------------------
# Reference in float64 numpy (ground truth for a sanity check)
# ---------------------------------------------------------------------------
def mel_spec_ref(audio, *, n_fft=256, hop_length=128, n_mels=32,
                 sample_rate=16000, power=1, f_min=40.0, f_max=7600.0, **_):
    audio = np.asarray(audio, np.float64)
    B, L = audio.shape
    remainder = (L - n_fft) % hop_length
    pad = 0 if remainder == 0 else hop_length - remainder
    audio = np.pad(audio, ((0, 0), (0, pad)))
    L = L + pad
    T = (L - n_fft) // hop_length + 1
    idx = np.arange(T)[:, None] * hop_length + np.arange(n_fft)[None, :]
    frames = audio[:, idx]                                  # (B, T, N)
    cos_b, sin_b = make_dft_basis(n_fft)
    re = frames @ cos_b
    im = frames @ sin_b
    p = re * re + im * im
    spec = p if power == 2 else np.sqrt(p)
    fb = make_mel_filterbank(n_fft // 2 + 1, n_mels, sample_rate,
                             f_min, f_max).astype(np.float64)
    mel = spec @ fb                                         # (B, T, M)
    return np.transpose(mel, (0, 2, 1)).astype(np.float32)


if __name__ == "__main__":
    key = jax.random.PRNGKey(0)
    B, L = 2, 1000
    # small-but-consistent MelSpec config: n_fft=256, hop=128, n_mels=32
    cfg = dict(n_fft=256, hop_length=128, n_mels=32, sample_rate=16000,
               power=1, f_min=40.0, f_max=7600.0, pad_end=True, center=False)
    audio = jax.random.normal(key, (B, L), dtype=jnp.float32)

    out = mel_spec(audio, **cfg)
    out = jax.block_until_ready(out)

    ref = mel_spec_ref(np.asarray(audio), **cfg)
    assert out.shape == (B, cfg["n_mels"], 7), out.shape
    # bf16 frames/basis (f32 accumulation) introduce ~0.1-1% relative error.
    np.testing.assert_allclose(np.asarray(out), ref, rtol=3e-2, atol=3e-2)

    print("KERNEL_OK")
</pallas_src>

<mosaic_0001>
module attributes {stable_mosaic.version = 11 : i64} {
  func.func @_melspec_kernel(%arg0: i32, %arg1: i32, %arg2: memref<1x8x256xbf16, #tpu.memory_space<vmem>>, %arg3: memref<256x512xbf16, #tpu.memory_space<vmem>>, %arg4: memref<256x128xf32, #tpu.memory_space<vmem>>, %arg5: memref<1x8x128xf32, #tpu.memory_space<vmem>>) attributes {dimension_semantics = [#tpu.dimension_semantics<parallel>, #tpu.dimension_semantics<parallel>], iteration_bounds = array<i64: 2, 1>, scalar_prefetch = 0 : i64, scratch_operands = 0 : i64, tpu.core_type = #tpu.core_type<tc>, window_params = [{transform_indices = @transform_0, window_bounds = array<i64: 1, 8, 256>}, {pipeline_mode = #tpu.pipeline_mode<synchronous>, transform_indices = @transform_1, window_bounds = array<i64: 256, 512>}, {pipeline_mode = #tpu.pipeline_mode<synchronous>, transform_indices = @transform_2, window_bounds = array<i64: 256, 128>}, {transform_indices = @transform_3, window_bounds = array<i64: 1, 8, 128>}]} {
    %c0 = arith.constant 0 : index
    %c0_0 = arith.constant 0 : index
    %c0_1 = arith.constant 0 : index
    %0 = vector.load %arg2[%c0, %c0_0, %c0_1] : memref<1x8x256xbf16, #tpu.memory_space<vmem>>, vector<1x8x256xbf16>
    %1 = vector.shape_cast %0 : vector<1x8x256xbf16> to vector<8x256xbf16>
    %c0_2 = arith.constant 0 : index
    %c0_3 = arith.constant 0 : index
    %2 = vector.load %arg3[%c0_2, %c0_3] : memref<256x512xbf16, #tpu.memory_space<vmem>>, vector<256x512xbf16>
    %cst = arith.constant dense<0.000000e+00> : vector<8x512xf32>
    %3 = tpu.matmul %1, %2, %cst {dimension_numbers = #tpu.dot_dimension_numbers<[1], [0], [0], [1], [0, 0, 1, 1], [], []>} : vector<8x256xbf16>, vector<256x512xbf16>, vector<8x512xf32> -> vector<8x512xf32>
    %4 = vector.extract_strided_slice %3 {offsets = [0, 0], sizes = [8, 256], strides = [1, 1]} : vector<8x512xf32> to vector<8x256xf32>
    %5 = vector.extract_strided_slice %3 {offsets = [0, 256], sizes = [8, 256], strides = [1, 1]} : vector<8x512xf32> to vector<8x256xf32>
    %6 = arith.mulf %4, %4 : vector<8x256xf32>
    %7 = arith.mulf %5, %5 : vector<8x256xf32>
    %8 = arith.addf %6, %7 : vector<8x256xf32>
    %9 = math.sqrt %8 : vector<8x256xf32>
    %c0_4 = arith.constant 0 : index
    %c0_5 = arith.constant 0 : index
    %10 = vector.load %arg4[%c0_4, %c0_5] : memref<256x128xf32, #tpu.memory_space<vmem>>, vector<256x128xf32>
    %cst_6 = arith.constant dense<0.000000e+00> : vector<8x128xf32>
    %11 = tpu.matmul %9, %10, %cst_6 {dimension_numbers = #tpu.dot_dimension_numbers<[1], [0], [0], [1], [0, 0, 1, 1], [], []>} : vector<8x256xf32>, vector<256x128xf32>, vector<8x128xf32> -> vector<8x128xf32>
    %c0_7 = arith.constant 0 : index
    %c0_8 = arith.constant 0 : index
    %c0_9 = arith.constant 0 : index
    %12 = vector.load %arg5[%c0_7, %c0_8, %c0_9] : memref<1x8x128xf32, #tpu.memory_space<vmem>>, vector<1x8x128xf32>
    %13 = vector.shape_cast %12 : vector<1x8x128xf32> to vector<8x128xf32>
    %14 = vector.shape_cast %11 : vector<8x128xf32> to vector<1x8x128xf32>
    tpu.vector_store %arg5[%c0_7, %c0_8, %c0_9], %14 {strides = array<i32>} : memref<1x8x128xf32, #tpu.memory_space<vmem>>, vector<1x8x128xf32>,
    return
  }
  func.func @transform_0(%arg0: i32, %arg1: i32) -> (i32, i32, i32) {
    %c0_i32 = arith.constant 0 : i32
    %c0_i32_0 = arith.constant 0 : i32
    return %arg0, %arg1, %c0_i32 : i32, i32, i32
  }
  func.func @transform_1(%arg0: i32, %arg1: i32) -> (i32, i32) {
    %c0_i32 = arith.constant 0 : i32
    %c0_i32_0 = arith.constant 0 : i32
    %c0_i32_1 = arith.constant 0 : i32
    return %c0_i32, %c0_i32_0 : i32, i32
  }
  func.func @transform_2(%arg0: i32, %arg1: i32) -> (i32, i32) {
    %c0_i32 = arith.constant 0 : i32
    %c0_i32_0 = arith.constant 0 : i32
    %c0_i32_1 = arith.constant 0 : i32
    return %c0_i32, %c0_i32_0 : i32, i32
  }
  func.func @transform_3(%arg0: i32, %arg1: i32) -> (i32, i32, i32) {
    %c0_i32 = arith.constant 0 : i32
    %c0_i32_0 = arith.constant 0 : i32
    return %arg0, %arg1, %c0_i32 : i32, i32, i32
  }
}

</mosaic_0001>

<llo_original>
// kernel: tpu_custom_call.1
$region0: #{tpu_custom_call.1}
  #allocation0 [shape = 'u32[]', space=smem, size = 0x4, offset = 0x4, fixed_abs, tag = 'smem constant byte address 0x4 - core index']
  #allocation1 [shape = 'u32[144,128]{1,0:T(1,128)}', space=vmem, size = 0x12000, scoped, tag = 'internal scratch']
  %s0 = inlined_call_operand.hbm [shape: bf16[2,8,256], index: 0, kind: input, shape index: {}]
  %s1 = inlined_call_operand.hbm [shape: bf16[256,512], index: 1, kind: input, shape index: {}]
  %s2 = inlined_call_operand.hbm [shape: f32[256,128], index: 2, kind: input, shape index: {}]
  %s3 = inlined_call_operand.hbm [shape: f32[2,8,128], index: 3, kind: output, shape index: {}]
  %s4 = sld [smem:[#allocation0]]
  $region57: #{tpu_custom_call.1} parent=0
    _
  %s6 = ssub.s32 1, %s4
  %s7 = scalar_select 0, %s6, %s4
  $region1: #{tpu_custom_call.1} parent=0
    #allocation2 [shape = 'u8[8192]{0}', space=vmem, size = 0x2000, scoped, tag = 'input window, operand 0']
    #allocation3 [shape = 's32[2]{0}', space=sflag, size = 0x8, scoped, tag = 'scoped memory for tpu_custom_call.1']
    #allocation4 [shape = 's32[2]{0}', space=sflag, size = 0x8, scoped, tag = 'scoped memory for tpu_custom_call.1']
    #allocation5 [shape = 'u8[262144]{0}', space=vmem, size = 0x40000, scoped, tag = 'input window, operand 1, single buffered']
    #allocation6 [shape = 's32[1]{0}', space=sflag, size = 0x4, scoped, tag = 'scoped memory for tpu_custom_call.1']
    #allocation7 [shape = 'u8[131072]{0}', space=vmem, size = 0x20000, scoped, tag = 'input window, operand 2, single buffered']
    #allocation8 [shape = 'u8[8192]{0}', space=vmem, size = 0x2000, scoped, tag = 'output window, operand 0']
    %8 = vsyncpa [#allocation3], 0
    %s9 = scalar_lea.sflag [#allocation3], 1
    %10 = vsyncpa %s9, 0
    %11 = vsyncpa [#allocation6], 0
    %12 = vsyncpa [#allocation4], 0
    %s13 = scalar_lea.sflag [#allocation4], 1
    %14 = vsyncpa %s13, 0
    loop: start=0, step=1, limit=4
    $region2: #{tpu_custom_call.1} parent=1 // loop_pre_header
      _
    $region3: #{tpu_custom_call.1} parent=1 // loop_header
      %s16 = sphi 0, %s20
      %p17 = scmp.ge.s32.totalorder %s16, 4
      %s23 = sphi 0, %s35
      %s24 = sphi 0, %s31
      %s25 = sphi 0, %s23
      %s26 = sphi 0, %s24
      %s27 = sphi 0, %s25
      %s28 = sphi 0, %s26
      %s40 = sphi 0, %s42
      %s43 = sphi 0, %s40
      %s44 = sphi 0, %s43
      %s60 = sphi 0, %s44
      %s64 = sphi 0, %s64
      %s66 = sphi 0, %s64
      %s67 = sphi 0, %s66
      %s81 = sphi 0, %s67
      %s85 = sphi 0, %s85
      %s87 = sphi 0, %s85
      %s88 = sphi 0, %s87
      %s102 = sphi 0, %s88
      %s110 = sphi 0, %s112
      %s113 = sphi 0, %s110
      %s114 = sphi 0, %s113
      %s130 = sphi 0, %s114
    $region4: #{tpu_custom_call.1} parent=1 // loop_header_branch
      %19 = sbr.rel (%p17) target = $region8
    $region5: #{tpu_custom_call.1} parent=1 // loop_body
      %s21 = ssub.s32 %s16, 1
      %s22 = ssub.s32 %s16, 2
      %s29 = sadd.s32 1, %s24
      %p30 = scmp.ge.s32.totalorder %s29, 1
      %s31 = scalar_select %p30, 0, %s29
      %s32 = sadd.s32 1, %s23
      %s33 = scalar_select %p30, %s32, %s23
      %p34 = scmp.ge.s32.totalorder %s33, 2
      %s35 = scalar_select %p34, 0, %s33
      %s36 = ssub.s32 %s23, %s35
      %s37 = ssub.s32 %s24, %s31
      %s38 = sor.u32 %s36, %s37
      %p39 = scmp.eq.s32.totalorder %s38, 0
      %s41 = sadd.s32 %s40, 1
      %s42 = scalar_select %p39, %s40, %s41
      %p45 = pneg %p39
      %p46 = scmp.eq.s32.totalorder %s16, 1
      %p47 = por %p45, %p46
      %p48 = scmp.ne.s32.totalorder %s40, %s43
      %p49 = scmp.eq.s32.totalorder %s16, 0
      %p50 = por %p48, %p49
      %p51 = scmp.ne.s32.totalorder %s40, %s43
      %p52 = scmp.eq.s32.totalorder %s21, 1
      %p53 = por %p51, %p52
      %p54 = scmp.ne.s32.totalorder %s43, %s44
      %p55 = scmp.eq.s32.totalorder %s21, 0
      %p56 = por %p54, %p55
      %p57 = scmp.ne.s32.totalorder %s43, %s44
      %p58 = scmp.eq.s32.totalorder %s22, 1
      %p59 = por %p57, %p58
      %p61 = scmp.ne.s32.totalorder %s44, %s60
      %p62 = scmp.eq.s32.totalorder %s22, 0
      %p63 = por %p61, %p62
      %s65 = sadd.s32 %s64, 1
      %p68 = scmp.eq.s32.totalorder %s16, 1
      %p69 = scmp.ne.s32.totalorder %s64, %s66
      %p70 = scmp.eq.s32.totalorder %s16, 0
      %p71 = por %p69, %p70
      %p72 = scmp.ne.s32.totalorder %s64, %s66
      %p73 = scmp.eq.s32.totalorder %s21, 1
      %p74 = por %p72, %p73
      %p75 = scmp.ne.s32.totalorder %s66, %s67
      %p76 = scmp.eq.s32.totalorder %s21, 0
      %p77 = por %p75, %p76
      %p78 = scmp.ne.s32.totalorder %s66, %s67
      %p79 = scmp.eq.s32.totalorder %s22, 1
      %p80 = por %p78, %p79
      %p82 = scmp.ne.s32.totalorder %s67, %s81
      %p83 = scmp.eq.s32.totalorder %s22, 0
      %p84 = por %p82, %p83
      %s86 = sadd.s32 %s85, 1
      %p89 = scmp.eq.s32.totalorder %s16, 1
      %p90 = scmp.ne.s32.totalorder %s85, %s87
      %p91 = scmp.eq.s32.totalorder %s16, 0
      %p92 = por %p90, %p91
      %p93 = scmp.ne.s32.totalorder %s85, %s87
      %p94 = scmp.eq.s32.totalorder %s21, 1
      %p95 = por %p93, %p94
      %p96 = scmp.ne.s32.totalorder %s87, %s88
      %p97 = scmp.eq.s32.totalorder %s21, 0
      %p98 = por %p96, %p97
      %p99 = scmp.ne.s32.totalorder %s87, %s88
      %p100 = scmp.eq.s32.totalorder %s22, 1
      %p101 = por %p99, %p100
      %p103 = scmp.ne.s32.totalorder %s88, %s102
      %p104 = scmp.eq.s32.totalorder %s22, 0
      %p105 = por %p103, %p104
      %s106 = ssub.s32 %s23, %s35
      %s107 = ssub.s32 %s24, %s31
      %s108 = sor.u32 %s106, %s107
      %p109 = scmp.eq.s32.totalorder %s108, 0
      %s111 = sadd.s32 %s110, 1
      %s112 = scalar_select %p109, %s110, %s111
      %p115 = pneg %p109
      %p116 = scmp.eq.s32.totalorder %s16, 1
      %p117 = por %p115, %p116
      %p118 = scmp.ne.s32.totalorder %s110, %s113
      %p119 = scmp.eq.s32.totalorder %s16, 0
      %p120 = por %p118, %p119
      %p121 = scmp.ne.s32.totalorder %s110, %s113
      %p122 = scmp.eq.s32.totalorder %s21, 1
      %p123 = por %p121, %p122
      %p124 = scmp.ne.s32.totalorder %s113, %s114
      %p125 = scmp.eq.s32.totalorder %s21, 0
      %p126 = por %p124, %p125
      %p127 = scmp.ne.s32.totalorder %s113, %s114
      %p128 = scmp.eq.s32.totalorder %s22, 1
      %p129 = por %p127, %p128
      %p131 = scmp.ne.s32.totalorder %s114, %s130
      %p132 = scmp.eq.s32.totalorder %s22, 0
      %p133 = por %p131, %p132
      %p134 = scmp.le.s32.totalorder 1, %s16
      %p135 = scmp.lt.s32.totalorder %s16, 3
      %p136 = pnand %p134, %p135
      %p137 = pneg %p136
      // Predicated region
      $region9: #{tpu_custom_call.1} parent=5 // pred_check
        _
      $region10: #{tpu_custom_call.1} parent=5 // pred_check_branch
        %139 = sbr.rel (%p136) target = $region12
      $region11: #{tpu_custom_call.1} parent=5 // pred_region
        %s140 = ssub.s32 %s16, 1
        // Predicated region
        $region13: #{tpu_custom_call.1} parent=11 // pred_check
          %p141 = pneg %p77
        $region14: #{tpu_custom_call.1} parent=11 // pred_check_branch
          %143 = sbr.rel (%p141) target = $region16
        $region15: #{tpu_custom_call.1} parent=11 // pred_region
          %s145 = ssub.s32 8192, 8192
          %146 = vsyncadd [#allocation6], %s145
          %s147 = sshll.u32 [#allocation5], 4
          %s148 = int_to_ptr.vmem [resolvable:$true] %s147
          %153 = dma.hbm_to_vmem [thread:$0]  %s1, 8192, %s148, [#allocation6], 256, 256, 16
        $region16: #{tpu_custom_call.1} parent=11 // pred_fallthru
          _
        // Predicated region
        $region17: #{tpu_custom_call.1} parent=11 // pred_check
          %p154 = pneg %p98
        $region18: #{tpu_custom_call.1} parent=11 // pred_check_branch
          %156 = sbr.rel (%p154) target = $region20
        $region19: #{tpu_custom_call.1} parent=11 // pred_region
          %s158 = ssub.s32 4096, 4096
          %159 = vsyncadd [#allocation6], %s158
          %s160 = sshll.u32 [#allocation7], 4
          %s161 = int_to_ptr.vmem [resolvable:$true] %s160
          %166 = dma.hbm_to_vmem [thread:$0]  %s2, 4096, %s161, [#allocation6], 128, 128, 8
        $region20: #{tpu_custom_call.1} parent=11 // pred_fallthru
          _
      $region12: #{tpu_custom_call.1} parent=5 // pred_fallthru
        _
      %p167 = scmp.lt.s32.totalorder %s16, 2
      // Predicated region
      $region21: #{tpu_custom_call.1} parent=5 // pred_check
        %p168 = pneg %p167
      $region22: #{tpu_custom_call.1} parent=5 // pred_check_branch
        %170 = sbr.rel (%p168) target = $region24
      $region23: #{tpu_custom_call.1} parent=5 // pred_region
        // Predicated region
        $region25: #{tpu_custom_call.1} parent=23 // pred_check
          %p171 = pneg %p50
        $region26: #{tpu_custom_call.1} parent=23 // pred_check_branch
          %173 = sbr.rel (%p171) target = $region28
        $region27: #{tpu_custom_call.1} parent=23 // pred_region
          %s174 = sand.u32 %s40, 1
          %s175 = scalar_lea.sflag [#allocation3], %s174
          %s176 = sand.u32 %s40, 1
          %s177 = smul.addr %s176, 8
          %s178 = scalar_lea.vmem [#allocation2], %s177
          %s180 = ssub.s32 128, 128
          %181 = vsyncadd %s175, %s180
          %s182 = smul.addr %s24, 2
          %s183 = smul.addr %s23, 2
          %s184 = sadd.s32 %s182, %s183
          %s185 = smul.addr %s184, 64
          %s186 = scalar_lea.hbm %s0, %s185
          %s188 = sshll.u32 %s178, 4
          %s189 = int_to_ptr.vmem [resolvable:$true] %s188
          %191 = dma.hbm_to_vmem [thread:$0]  %s186, 128, %s189, %s175
        $region28: #{tpu_custom_call.1} parent=23 // pred_fallthru
          _
      $region24: #{tpu_custom_call.1} parent=5 // pred_fallthru
        _
      %p192 = scmp.le.s32.totalorder 1, %s16
      %p193 = scmp.lt.s32.totalorder %s16, 3
      %p194 = pnand %p192, %p193
      %p195 = pneg %p194
      // Predicated region
      $region29: #{tpu_custom_call.1} parent=5 // pred_check
        _
      $region30: #{tpu_custom_call.1} parent=5 // pred_check_branch
        %197 = sbr.rel (%p194) target = $region32
      $region31: #{tpu_custom_call.1} parent=5 // pred_region
        %s198 = ssub.s32 %s16, 1
        %s199 = sand.u32 %s43, 1
        %s200 = scalar_lea.sflag [#allocation3], %s199
        %s201 = sand.u32 %s43, 1
        %s202 = smul.addr %s201, 8
        %s203 = scalar_lea.vmem [#allocation2], %s202
        // Predicated region
        $region33: #{tpu_custom_call.1} parent=31 // pred_check
          %p204 = pneg %p56
        $region34: #{tpu_custom_call.1} parent=31 // pred_check_branch
          %206 = sbr.rel (%p204) target = $region36
        $region35: #{tpu_custom_call.1} parent=31 // pred_region
          %207 = dma.done %s200, 128
        $region36: #{tpu_custom_call.1} parent=31 // pred_fallthru
          _
        // Predicated region
        $region37: #{tpu_custom_call.1} parent=31 // pred_check
          %p208 = pneg %p77
        $region38: #{tpu_custom_call.1} parent=31 // pred_check_branch
          %210 = sbr.rel (%p208) target = $region40
        $region39: #{tpu_custom_call.1} parent=31 // pred_region
          %211 = dma.done [#allocation6], 8192
        $region40: #{tpu_custom_call.1} parent=31 // pred_fallthru
          _
        // Predicated region
        $region41: #{tpu_custom_call.1} parent=31 // pred_check
          %p212 = pneg %p98
        $region42: #{tpu_custom_call.1} parent=31 // pred_check_branch
          %214 = sbr.rel (%p212) target = $region44
        $region43: #{tpu_custom_call.1} parent=31 // pred_region
          %215 = dma.done [#allocation6], 4096
        $region44: #{tpu_custom_call.1} parent=31 // pred_fallthru
          _
        %s216 = sand.u32 %s43, 1
        %s217 = scalar_lea.sflag [#allocation3], %s216
        %s218 = sand.u32 %s43, 1
        %s219 = smul.addr %s218, 8
        %s220 = scalar_lea.vmem [#allocation2], %s219
        %p221 = pneg %p56
        %p222 = pneg %p53
        %p223 = pneg %p77
        %p224 = pneg %p74
        %p225 = pneg %p98
        %p226 = pneg %p95
        %p227 = pneg %p126
        %p228 = pneg %p123
        %s229 = sand.u32 %s113, 1
        %s230 = scalar_lea.sflag [#allocation4], %s229
        %s231 = sand.u32 %s113, 1
        %s232 = smul.addr %s231, 8
        %s233 = scalar_lea.vmem [#allocation8], %s232
        %v234 = vld [vmem:[%s203] sm:$0xff]
        %v235 = vld [vmem:[#allocation5] sm:$0xff]
        %v236 = vld [vmem:[#allocation5 + $0x8] sm:$0xff]
        %v237 = vld [vmem:[#allocation5 + $0x10] sm:$0xff]
        %v238 = vld [vmem:[#allocation5 + $0x18] sm:$0xff]
        %v239 = vld [vmem:[#allocation5 + $0x20] sm:$0xff]
        %v240 = vld [vmem:[#allocation5 + $0x28] sm:$0xff]
        %v241 = vld [vmem:[#allocation5 + $0x30] sm:$0xff]
        %v242 = vld [vmem:[#allocation5 + $0x38] sm:$0xff]
        %v243 = vld [vmem:[#allocation5 + $0x40] sm:$0xff]
        %v244 = vld [vmem:[#allocation5 + $0x48] sm:$0xff]
        %v245 = vld [vmem:[#allocation5 + $0x50] sm:$0xff]
        %v246 = vld [vmem:[#allocation5 + $0x58] sm:$0xff]
        %v247 = vld [vmem:[#allocation5 + $0x60] sm:$0xff]
        %v248 = vld [vmem:[#allocation5 + $0x68] sm:$0xff]
        %v249 = vld [vmem:[#allocation5 + $0x70] sm:$0xff]
        %v250 = vld [vmem:[#allocation5 + $0x78] sm:$0xff]
        %v251 = vld [vmem:[#allocation5 + $0x80] sm:$0xff]
        %v252 = vld [vmem:[#allocation5 + $0x88] sm:$0xff]
        %v253 = vld [vmem:[#allocation5 + $0x90] sm:$0xff]
        %v254 = vld [vmem:[#allocation5 + $0x98] sm:$0xff]
        %v255 = vld [vmem:[#allocation5 + $0xa0] sm:$0xff]
        %v256 = vld [vmem:[#allocation5 + $0xa8] sm:$0xff]
        %v257 = vld [vmem:[#allocation5 + $0xb0] sm:$0xff]
        %v258 = vld [vmem:[#allocation5 + $0xb8] sm:$0xff]
        %v259 = vld [vmem:[#allocation5 + $0xc0] sm:$0xff]
        %v260 = vld [vmem:[#allocation5 + $0xc8] sm:$0xff]
        %v261 = vld [vmem:[#allocation5 + $0xd0] sm:$0xff]
        %v262 = vld [vmem:[#allocation5 + $0xd8] sm:$0xff]
        %v263 = vld [vmem:[#allocation5 + $0xe0] sm:$0xff]
        %v264 = vld [vmem:[#allocation5 + $0xe8] sm:$0xff]
        %v265 = vld [vmem:[#allocation5 + $0xf0] sm:$0xff]
        %v266 = vld [vmem:[#allocation5 + $0xf8] sm:$0xff]
        %v267 = vld [vmem:[#allocation5 + $0x100] sm:$0xff]
        %v268 = vld [vmem:[#allocation5 + $0x108] sm:$0xff]
        %v269 = vld [vmem:[#allocation5 + $0x110] sm:$0xff]
        %v270 = vld [vmem:[#allocation5 + $0x118] sm:$0xff]
        %v271 = vld [vmem:[#allocation5 + $0x120] sm:$0xff]
        %v272 = vld [vmem:[#allocation5 + $0x128] sm:$0xff]
        %v273 = vld [vmem:[#allocation5 + $0x130] sm:$0xff]
        %v274 = vld [vmem:[#allocation5 + $0x138] sm:$0xff]
        %v275 = vld [vmem:[#allocation5 + $0x140] sm:$0xff]
        %v276 = vld [vmem:[#allocation5 + $0x148] sm:$0xff]
        %v277 = vld [vmem:[#allocation5 + $0x150] sm:$0xff]
        %v278 = vld [vmem:[#allocation5 + $0x158] sm:$0xff]
        %v279 = vld [vmem:[#allocation5 + $0x160] sm:$0xff]
        %v280 = vld [vmem:[#allocation5 + $0x168] sm:$0xff]
        %v281 = vld [vmem:[#allocation5 + $0x170] sm:$0xff]
        %v282 = vld [vmem:[#allocation5 + $0x178] sm:$0xff]
        %v283 = vld [vmem:[#allocation5 + $0x180] sm:$0xff]
        %v284 = vld [vmem:[#allocation5 + $0x188] sm:$0xff]
        %v285 = vld [vmem:[#allocation5 + $0x190] sm:$0xff]
        %v286 = vld [vmem:[#allocation5 + $0x198] sm:$0xff]
        %v287 = vld [vmem:[#allocation5 + $0x1a0] sm:$0xff]
        %v288 = vld [vmem:[#allocation5 + $0x1a8] sm:$0xff]
        %v289 = vld [vmem:[#allocation5 + $0x1b0] sm:$0xff]
        %v290 = vld [vmem:[#allocation5 + $0x1b8] sm:$0xff]
        %v291 = vld [vmem:[#allocation5 + $0x1c0] sm:$0xff]
        %v292 = vld [vmem:[#allocation5 + $0x1c8] sm:$0xff]
        %v293 = vld [vmem:[#allocation5 + $0x1d0] sm:$0xff]
        %v294 = vld [vmem:[#allocation5 + $0x1d8] sm:$0xff]
        %v295 = vld [vmem:[#allocation5 + $0x1e0] sm:$0xff]
        %v296 = vld [vmem:[#allocation5 + $0x1e8] sm:$0xff]
        %v297 = vld [vmem:[#allocation5 + $0x1f0] sm:$0xff]
        %v298 = vld [vmem:[#allocation5 + $0x1f8] sm:$0xff]
        %v300 = vunpack.c.l.b16 %v234
        %v301 = vunpack.c.h.b16 %v234
        %v302 = vpack.c.b16 %v300, %v300
        %v303 = vpack.c.b16 %v301, %v301
        %v370 = vunpack.c.l.b16 %v235
        %v371 = vunpack.c.h.b16 %v235
        %v372 = vunpack.c.l.b16 %v236
        %v373 = vunpack.c.h.b16 %v236
        %v374 = vunpack.c.l.b16 %v237
        %v375 = vunpack.c.h.b16 %v237
        %v376 = vunpack.c.l.b16 %v238
        %v377 = vunpack.c.h.b16 %v238
        %v378 = vunpack.c.l.b16 %v239
        %v379 = vunpack.c.h.b16 %v239
        %v380 = vunpack.c.l.b16 %v240
        %v381 = vunpack.c.h.b16 %v240
        %v382 = vunpack.c.l.b16 %v241
        %v383 = vunpack.c.h.b16 %v241
        %v384 = vunpack.c.l.b16 %v242
        %v385 = vunpack.c.h.b16 %v242
        %v386 = vunpack.c.l.b16 %v243
        %v387 = vunpack.c.h.b16 %v243
        %v388 = vunpack.c.l.b16 %v244
        %v389 = vunpack.c.h.b16 %v244
        %v390 = vunpack.c.l.b16 %v245
        %v391 = vunpack.c.h.b16 %v245
        %v392 = vunpack.c.l.b16 %v246
        %v393 = vunpack.c.h.b16 %v246
        %v394 = vunpack.c.l.b16 %v247
        %v395 = vunpack.c.h.b16 %v247
        %v396 = vunpack.c.l.b16 %v248
        %v397 = vunpack.c.h.b16 %v248
        %v398 = vunpack.c.l.b16 %v249
        %v399 = vunpack.c.h.b16 %v249
        %v400 = vunpack.c.l.b16 %v250
        %v401 = vunpack.c.h.b16 %v250
        %v402 = vunpack.c.l.b16 %v251
        %v403 = vunpack.c.h.b16 %v251
        %v404 = vunpack.c.l.b16 %v252
        %v405 = vunpack.c.h.b16 %v252
        %v406 = vunpack.c.l.b16 %v253
        %v407 = vunpack.c.h.b16 %v253
        %v408 = vunpack.c.l.b16 %v254
        %v409 = vunpack.c.h.b16 %v254
        %v410 = vunpack.c.l.b16 %v255
        %v411 = vunpack.c.h.b16 %v255
        %v412 = vunpack.c.l.b16 %v256
        %v413 = vunpack.c.h.b16 %v256
        %v414 = vunpack.c.l.b16 %v257
        %v415 = vunpack.c.h.b16 %v257
        %v416 = vunpack.c.l.b16 %v258
        %v417 = vunpack.c.h.b16 %v258
        %v418 = vunpack.c.l.b16 %v259
        %v419 = vunpack.c.h.b16 %v259
        %v420 = vunpack.c.l.b16 %v260
        %v421 = vunpack.c.h.b16 %v260
        %v422 = vunpack.c.l.b16 %v261
        %v423 = vunpack.c.h.b16 %v261
        %v424 = vunpack.c.l.b16 %v262
        %v425 = vunpack.c.h.b16 %v262
        %v426 = vunpack.c.l.b16 %v263
        %v427 = vunpack.c.h.b16 %v263
        %v428 = vunpack.c.l.b16 %v264
        %v429 = vunpack.c.h.b16 %v264
        %v430 = vunpack.c.l.b16 %v265
        %v431 = vunpack.c.h.b16 %v265
        %v432 = vunpack.c.l.b16 %v266
        %v433 = vunpack.c.h.b16 %v266
        %v434 = vunpack.c.l.b16 %v267
        %v435 = vunpack.c.h.b16 %v267
        %v436 = vunpack.c.l.b16 %v268
        %v437 = vunpack.c.h.b16 %v268
        %v438 = vunpack.c.l.b16 %v269
        %v439 = vunpack.c.h.b16 %v269
        %v440 = vunpack.c.l.b16 %v270
        %v441 = vunpack.c.h.b16 %v270
        %v442 = vunpack.c.l.b16 %v271
        %v443 = vunpack.c.h.b16 %v271
        %v444 = vunpack.c.l.b16 %v272
        %v445 = vunpack.c.h.b16 %v272
        %v446 = vunpack.c.l.b16 %v273
        %v447 = vunpack.c.h.b16 %v273
        %v448 = vunpack.c.l.b16 %v274
        %v449 = vunpack.c.h.b16 %v274
        %v450 = vunpack.c.l.b16 %v275
        %v451 = vunpack.c.h.b16 %v275
        %v452 = vunpack.c.l.b16 %v276
        %v453 = vunpack.c.h.b16 %v276
        %v454 = vunpack.c.l.b16 %v277
        %v455 = vunpack.c.h.b16 %v277
        %v456 = vunpack.c.l.b16 %v278
        %v457 = vunpack.c.h.b16 %v278
        %v458 = vunpack.c.l.b16 %v279
        %v459 = vunpack.c.h.b16 %v279
        %v460 = vunpack.c.l.b16 %v280
        %v461 = vunpack.c.h.b16 %v280
        %v462 = vunpack.c.l.b16 %v281
        %v463 = vunpack.c.h.b16 %v281
        %v464 = vunpack.c.l.b16 %v282
        %v465 = vunpack.c.h.b16 %v282
        %v466 = vunpack.c.l.b16 %v283
        %v467 = vunpack.c.h.b16 %v283
        %v468 = vunpack.c.l.b16 %v284
        %v469 = vunpack.c.h.b16 %v284
        %v470 = vunpack.c.l.b16 %v285
        %v471 = vunpack.c.h.b16 %v285
        %v472 = vunpack.c.l.b16 %v286
        %v473 = vunpack.c.h.b16 %v286
        %v474 = vunpack.c.l.b16 %v287
        %v475 = vunpack.c.h.b16 %v287
        %v476 = vunpack.c.l.b16 %v288
        %v477 = vunpack.c.h.b16 %v288
        %v478 = vunpack.c.l.b16 %v289
        %v479 = vunpack.c.h.b16 %v289
        %v480 = vunpack.c.l.b16 %v290
        %v481 = vunpack.c.h.b16 %v290
        %v482 = vunpack.c.l.b16 %v291
        %v483 = vunpack.c.h.b16 %v291
        %v484 = vunpack.c.l.b16 %v292
        %v485 = vunpack.c.h.b16 %v292
        %v486 = vunpack.c.l.b16 %v293
        %v487 = vunpack.c.h.b16 %v293
        %v488 = vunpack.c.l.b16 %v294
        %v489 = vunpack.c.h.b16 %v294
        %v490 = vunpack.c.l.b16 %v295
        %v491 = vunpack.c.h.b16 %v295
        %v492 = vunpack.c.l.b16 %v296
        %v493 = vunpack.c.h.b16 %v296
        %v494 = vunpack.c.l.b16 %v297
        %v495 = vunpack.c.h.b16 %v297
        %v496 = vunpack.c.l.b16 %v298
        %v497 = vunpack.c.h.b16 %v298
        %v498 = vpack.c.b16 %v374, %v370
        %v499 = vpack.c.b16 %v375, %v371
        %v500 = vpack.c.b16 %v376, %v372
        %v501 = vpack.c.b16 %v377, %v373
        %v502 = vpack.c.b16 %v382, %v378
        %v503 = vpack.c.b16 %v383, %v379
        %v504 = vpack.c.b16 %v384, %v380
        %v505 = vpack.c.b16 %v385, %v381
        %v506 = vpack.c.b16 %v390, %v386
        %v507 = vpack.c.b16 %v391, %v387
        %v508 = vpack.c.b16 %v392, %v388
        %v509 = vpack.c.b16 %v393, %v389
        %v510 = vpack.c.b16 %v398, %v394
        %v511 = vpack.c.b16 %v399, %v395
        %v512 = vpack.c.b16 %v400, %v396
        %v513 = vpack.c.b16 %v401, %v397
        %v514 = vpack.c.b16 %v406, %v402
        %v515 = vpack.c.b16 %v407, %v403
        %v516 = vpack.c.b16 %v408, %v404
        %v517 = vpack.c.b16 %v409, %v405
        %v518 = vpack.c.b16 %v414, %v410
        %v519 = vpack.c.b16 %v415, %v411
        %v520 = vpack.c.b16 %v416, %v412
        %v521 = vpack.c.b16 %v417, %v413
        %v522 = vpack.c.b16 %v422, %v418
        %v523 = vpack.c.b16 %v423, %v419
        %v524 = vpack.c.b16 %v424, %v420
        %v525 = vpack.c.b16 %v425, %v421
        %v526 = vpack.c.b16 %v430, %v426
        %v527 = vpack.c.b16 %v431, %v427
        %v528 = vpack.c.b16 %v432, %v428
        %v529 = vpack.c.b16 %v433, %v429
        %v530 = vpack.c.b16 %v438, %v434
        %v531 = vpack.c.b16 %v439, %v435
        %v532 = vpack.c.b16 %v440, %v436
        %v533 = vpack.c.b16 %v441, %v437
        %v534 = vpack.c.b16 %v446, %v442
        %v535 = vpack.c.b16 %v447, %v443
        %v536 = vpack.c.b16 %v448, %v444
        %v537 = vpack.c.b16 %v449, %v445
        %v538 = vpack.c.b16 %v454, %v450
        %v539 = vpack.c.b16 %v455, %v451
        %v540 = vpack.c.b16 %v456, %v452
        %v541 = vpack.c.b16 %v457, %v453
        %v542 = vpack.c.b16 %v462, %v458
        %v543 = vpack.c.b16 %v463, %v459
        %v544 = vpack.c.b16 %v464, %v460
        %v545 = vpack.c.b16 %v465, %v461
        %v546 = vpack.c.b16 %v470, %v466
        %v547 = vpack.c.b16 %v471, %v467
        %v548 = vpack.c.b16 %v472, %v468
        %v549 = vpack.c.b16 %v473, %v469
        %v550 = vpack.c.b16 %v478, %v474
        %v551 = vpack.c.b16 %v479, %v475
        %v552 = vpack.c.b16 %v480, %v476
        %v553 = vpack.c.b16 %v481, %v477
        %v554 = vpack.c.b16 %v486, %v482
        %v555 = vpack.c.b16 %v487, %v483
        %v556 = vpack.c.b16 %v488, %v484
        %v557 = vpack.c.b16 %v489, %v485
        %v558 = vpack.c.b16 %v494, %v490
        %v559 = vpack.c.b16 %v495, %v491
        %v560 = vpack.c.b16 %v496, %v492
        %v561 = vpack.c.b16 %v497, %v493
        %626 = vmatprep.subr.bf16.mxu0 %v499
        %627 = vmatpush1.bf16.msra.mxu0 %v498
        %628 = vmatprep.subr.bf16.mxu0 %v503
        %629 = vmatpush1.bf16.msra.mxu0 %v502
        %630 = vmatprep.subr.bf16.mxu0 %v507
        %631 = vmatpush1.bf16.msra.mxu0 %v506
        %632 = vmatprep.subr.bf16.mxu0 %v511
        %633 = vmatpush1.bf16.msra.mxu0 %v510
        %634 = vmatprep.subr.bf16.mxu0 %v515
        %635 = vmatpush1.bf16.msra.mxu0 %v514
        %636 = vmatprep.subr.bf16.mxu0 %v519
        %637 = vmatpush1.bf16.msra.mxu0 %v518
        %638 = vmatprep.subr.bf16.mxu0 %v523
        %639 = vmatpush1.bf16.msra.mxu0 %v522
        %640 = vmatprep.subr.bf16.mxu0 %v527
        %641 = vmatpush1.bf16.msra.mxu0 %v526
        %642 = vmatprep.subr.bf16.mxu0 %v531
        %643 = vmatpush1.bf16.msra.mxu0 %v530
        %644 = vmatprep.subr.bf16.mxu0 %v535
        %645 = vmatpush1.bf16.msra.mxu0 %v534
        %646 = vmatprep.subr.bf16.mxu0 %v539
        %647 = vmatpush1.bf16.msra.mxu0 %v538
        %648 = vmatprep.subr.bf16.mxu0 %v543
        %649 = vmatpush1.bf16.msra.mxu0 %v542
        %650 = vmatprep.subr.bf16.mxu0 %v547
        %651 = vmatpush1.bf16.msra.mxu0 %v546
        %652 = vmatprep.subr.bf16.mxu0 %v551
        %653 = vmatpush1.bf16.msra.mxu0 %v550
        %654 = vmatprep.subr.bf16.mxu0 %v555
        %655 = vmatpush1.bf16.msra.mxu0 %v554
        %656 = vmatprep.subr.bf16.mxu0 %v559
        %657 = vmatpush1.bf16.msra.mxu0 %v558
        %658 = vmatprep.mubr.bf16.mxu0 %v303
        %659 = vmatmul.mubr.bf16.gmra.mrb[0].mxu0 %v302
        %v660 = vpop.f32.mrb[0].mxu0
        %v661 = vadd.f32 0.0, %v660
        %v662 = vpop.f32.mrb[0].mxu0
        %v663 = vadd.f32 0.0, %v662
        %v664 = vpop.f32.mrb[0].mxu0
        %v665 = vpop.f32.mrb[0].mxu0
        %666 = vdwg.mxu0
        %667 = vmatprep.subr.bf16.mxu0 %v501
        %668 = vmatpush1.bf16.msra.mxu0 %v500
        %669 = vmatprep.subr.bf16.mxu0 %v505
        %670 = vmatpush1.bf16.msra.mxu0 %v504
        %671 = vmatprep.subr.bf16.mxu0 %v509
        %672 = vmatpush1.bf16.msra.mxu0 %v508
        %673 = vmatprep.subr.bf16.mxu0 %v513
        %674 = vmatpush1.bf16.msra.mxu0 %v512
        %675 = vmatprep.subr.bf16.mxu0 %v517
        %676 = vmatpush1.bf16.msra.mxu0 %v516
        %677 = vmatprep.subr.bf16.mxu0 %v521
        %678 = vmatpush1.bf16.msra.mxu0 %v520
        %679 = vmatprep.subr.bf16.mxu0 %v525
        %680 = vmatpush1.bf16.msra.mxu0 %v524
        %681 = vmatprep.subr.bf16.mxu0 %v529
        %682 = vmatpush1.bf16.msra.mxu0 %v528
        %683 = vmatprep.subr.bf16.mxu0 %v533
        %684 = vmatpush1.bf16.msra.mxu0 %v532
        %685 = vmatprep.subr.bf16.mxu0 %v537
        %686 = vmatpush1.bf16.msra.mxu0 %v536
        %687 = vmatprep.subr.bf16.mxu0 %v541
        %688 = vmatpush1.bf16.msra.mxu0 %v540
        %689 = vmatprep.subr.bf16.mxu0 %v545
        %690 = vmatpush1.bf16.msra.mxu0 %v544
        %691 = vmatprep.subr.bf16.mxu0 %v549
        %692 = vmatpush1.bf16.msra.mxu0 %v548
        %693 = vmatprep.subr.bf16.mxu0 %v553
        %694 = vmatpush1.bf16.msra.mxu0 %v552
        %695 = vmatprep.subr.bf16.mxu0 %v557
        %696 = vmatpush1.bf16.msra.mxu0 %v556
        %697 = vmatprep.subr.bf16.mxu0 %v561
        %698 = vmatpush1.bf16.msra.mxu0 %v560
        %699 = vmatprep.mubr.bf16.mxu0 %v303
        %700 = vmatmul.mubr.bf16.gmra.mrb[0].mxu0 %v302
        %v701 = vpop.f32.mrb[0].mxu0
        %v702 = vadd.f32 0.0, %v701
        %v703 = vpop.f32.mrb[0].mxu0
        %v704 = vadd.f32 0.0, %v703
        %v705 = vpop.f32.mrb[0].mxu0
        %v706 = vpop.f32.mrb[0].mxu0
        %707 = vdwg.mxu0
        %v708 = vmul.f32 %v661, %v661
        %v709 = vmul.f32 %v663, %v663
        %v710 = vmul.f32 %v702, %v702
        %v711 = vmul.f32 %v704, %v704
        %v712 = vadd.f32 %v708, %v710
        %v713 = vadd.f32 %v709, %v711
        %v714 = vrsqrt.pop %v712
        %v715 = vmul.f32 %v712, %v714
        %vm716 = vcmp.eq.f32.partialorder %v712, inf
        %v717 = vsel %vm716, %v712, %v715
        %vm718 = vcmp.eq.f32.partialorder %v712, 0.0
        %v719 = vand.u32 %v712, 2147483648
        %v720 = vsel %vm718, %v719, %v717
        %v721 = vrsqrt.pop %v713
        %v722 = vmul.f32 %v713, %v721
        %vm723 = vcmp.eq.f32.partialorder %v713, inf
        %v724 = vsel %vm723, %v713, %v722
        %vm725 = vcmp.eq.f32.partialorder %v713, 0.0
        %v726 = vand.u32 %v713, 2147483648
        %v727 = vsel %vm725, %v726, %v724
        %v728 = vld [vmem:[#allocation7] sm:$0xff]
        %v729 = vld [vmem:[#allocation7 + $0x8] sm:$0xff]
        %v730 = vld [vmem:[#allocation7 + $0x10] sm:$0xff]
        %v731 = vld [vmem:[#allocation7 + $0x18] sm:$0xff]
        %v732 = vld [vmem:[#allocation7 + $0x20] sm:$0xff]
        %v733 = vld [vmem:[#allocation7 + $0x28] sm:$0xff]
        %v734 = vld [vmem:[#allocation7 + $0x30] sm:$0xff]
        %v735 = vld [vmem:[#allocation7 + $0x38] sm:$0xff]
        %v736 = vld [vmem:[#allocation7 + $0x40] sm:$0xff]
        %v737 = vld [vmem:[#allocation7 + $0x48] sm:$0xff]
        %v738 = vld [vmem:[#allocation7 + $0x50] sm:$0xff]
        %v739 = vld [vmem:[#allocation7 + $0x58] sm:$0xff]
        %v740 = vld [vmem:[#allocation7 + $0x60] sm:$0xff]
        %v741 = vld [vmem:[#allocation7 + $0x68] sm:$0xff]
        %v742 = vld [vmem:[#allocation7 + $0x70] sm:$0xff]
        %v743 = vld [vmem:[#allocation7 + $0x78] sm:$0xff]
        %v744 = vld [vmem:[#allocation7 + $0x80] sm:$0xff]
        %v745 = vld [vmem:[#allocation7 + $0x88] sm:$0xff]
        %v746 = vld [vmem:[#allocation7 + $0x90] sm:$0xff]
        %v747 = vld [vmem:[#allocation7 + $0x98] sm:$0xff]
        %v748 = vld [vmem:[#allocation7 + $0xa0] sm:$0xff]
        %v749 = vld [vmem:[#allocation7 + $0xa8] sm:$0xff]
        %v750 = vld [vmem:[#allocation7 + $0xb0] sm:$0xff]
        %v751 = vld [vmem:[#allocation7 + $0xb8] sm:$0xff]
        %v752 = vld [vmem:[#allocation7 + $0xc0] sm:$0xff]
        %v753 = vld [vmem:[#allocation7 + $0xc8] sm:$0xff]
        %v754 = vld [vmem:[#allocation7 + $0xd0] sm:$0xff]
        %v755 = vld [vmem:[#allocation7 + $0xd8] sm:$0xff]
        %v756 = vld [vmem:[#allocation7 + $0xe0] sm:$0xff]
        %v757 = vld [vmem:[#allocation7 + $0xe8] sm:$0xff]
        %v758 = vld [vmem:[#allocation7 + $0xf0] sm:$0xff]
        %v759 = vld [vmem:[#allocation7 + $0xf8] sm:$0xff]
        %760 = vmatprep.subr.mxu0 0.0
        %761 = vmatpush1.msra.mxu0 %v728
        %762 = vmatprep.subr.mxu0 0.0
        %763 = vmatpush1.msra.mxu0 %v729
        %764 = vmatprep.subr.mxu0 0.0
        %765 = vmatpush1.msra.mxu0 %v730
        %766 = vmatprep.subr.mxu0 0.0
        %767 = vmatpush1.msra.mxu0 %v731
        %768 = vmatprep.subr.mxu0 0.0
        %769 = vmatpush1.msra.mxu0 %v732
        %770 = vmatprep.subr.mxu0 0.0
        %771 = vmatpush1.msra.mxu0 %v733
        %772 = vmatprep.subr.mxu0 0.0
        %773 = vmatpush1.msra.mxu0 %v734
        %774 = vmatprep.subr.mxu0 0.0
        %775 = vmatpush1.msra.mxu0 %v735
        %776 = vmatprep.subr.mxu0 0.0
        %777 = vmatpush1.msra.mxu0 %v736
        %778 = vmatprep.subr.mxu0 0.0
        %779 = vmatpush1.msra.mxu0 %v737
        %780 = vmatprep.subr.mxu0 0.0
        %781 = vmatpush1.msra.mxu0 %v738
        %782 = vmatprep.subr.mxu0 0.0
        %783 = vmatpush1.msra.mxu0 %v739
        %784 = vmatprep.subr.mxu0 0.0
        %785 = vmatpush1.msra.mxu0 %v740
        %786 = vmatprep.subr.mxu0 0.0
        %787 = vmatpush1.msra.mxu0 %v741
        %788 = vmatprep.subr.mxu0 0.0
        %789 = vmatpush1.msra.mxu0 %v742
        %790 = vmatprep.subr.mxu0 0.0
        %791 = vmatpush1.msra.mxu0 %v743
        %792 = vmatprep.subr.mxu0 0.0
        %793 = vmatpush1.msra.mxu0 %v744
        %794 = vmatprep.subr.mxu0 0.0
        %795 = vmatpush1.msra.mxu0 %v745
        %796 = vmatprep.subr.mxu0 0.0
        %797 = vmatpush1.msra.mxu0 %v746
        %798 = vmatprep.subr.mxu0 0.0
        %799 = vmatpush1.msra.mxu0 %v747
        %800 = vmatprep.subr.mxu0 0.0
        %801 = vmatpush1.msra.mxu0 %v748
        %802 = vmatprep.subr.mxu0 0.0
        %803 = vmatpush1.msra.mxu0 %v749
        %804 = vmatprep.subr.mxu0 0.0
        %805 = vmatpush1.msra.mxu0 %v750
        %806 = vmatprep.subr.mxu0 0.0
        %807 = vmatpush1.msra.mxu0 %v751
        %808 = vmatprep.subr.mxu0 0.0
        %809 = vmatpush1.msra.mxu0 %v752
        %810 = vmatprep.subr.mxu0 0.0
        %811 = vmatpush1.msra.mxu0 %v753
        %812 = vmatprep.subr.mxu0 0.0
        %813 = vmatpush1.msra.mxu0 %v754
        %814 = vmatprep.subr.mxu0 0.0
        %815 = vmatpush1.msra.mxu0 %v755
        %816 = vmatprep.subr.mxu0 0.0
        %817 = vmatpush1.msra.mxu0 %v756
        %818 = vmatprep.subr.mxu0 0.0
        %819 = vmatpush1.msra.mxu0 %v757
        %820 = vmatprep.subr.mxu0 0.0
        %821 = vmatpush1.msra.mxu0 %v758
        %822 = vmatprep.subr.mxu0 0.0
        %823 = vmatpush1.msra.mxu0 %v759
        %824 = vmatprep.mubr.f32.mxu0 %v727
        %825 = vmatmul.mubr.f32.gmra.mrb[0].mxu0 %v720
        %v826 = vpop.f32.mrb[0].mxu0
        %v827 = vadd.f32 0.0, %v826
        %v828 = vpop.f32.mrb[0].mxu0
        %829 = vdwg.mxu0
        %830 = vst [vmem:[%s233] sm:$0xff] %v827
        %s831 = sand.u32 %s113, 1
        %s832 = scalar_lea.sflag [#allocation4], %s831
        %s833 = sand.u32 %s113, 1
        %s834 = smul.addr %s833, 8
        %s835 = scalar_lea.vmem [#allocation8], %s834
        // Predicated region
        $region45: #{tpu_custom_call.1} parent=31 // pred_check
          %p836 = pneg %p123
        $region46: #{tpu_custom_call.1} parent=31 // pred_check_branch
          %838 = sbr.rel (%p836) target = $region48
        $region47: #{tpu_custom_call.1} parent=31 // pred_region
          %s840 = ssub.s32 128, 128
          %841 = vsyncadd %s832, %s840
          %s842 = sadd.s32 %s26, %s25
          %s843 = smul.addr %s842, 128
          %s844 = scalar_lea.hbm %s3, %s843
          %s846 = sshll.u32 %s835, 4
          %s847 = int_to_ptr.vmem [resolvable:$true] %s846
          %849 = dma.vmem_to_hbm [thread:$0]  %s847, 128, %s844, %s832
        $region48: #{tpu_custom_call.1} parent=31 // pred_fallthru
          _
      $region32: #{tpu_custom_call.1} parent=5 // pred_fallthru
        _
      %p850 = scmp.le.s32.totalorder 2, %s16
      // Predicated region
      $region49: #{tpu_custom_call.1} parent=5 // pred_check
        %p851 = pneg %p850
      $region50: #{tpu_custom_call.1} parent=5 // pred_check_branch
        %853 = sbr.rel (%p851) target = $region52
      $region51: #{tpu_custom_call.1} parent=5 // pred_region
        %s854 = ssub.s32 %s16, 2
        // Predicated region
        $region53: #{tpu_custom_call.1} parent=51 // pred_check
          %p855 = pneg %p129
        $region54: #{tpu_custom_call.1} parent=51 // pred_check_branch
          %857 = sbr.rel (%p855) target = $region56
        $region55: #{tpu_custom_call.1} parent=51 // pred_region
          %s858 = sand.u32 %s114, 1
          %s859 = scalar_lea.sflag [#allocation4], %s858
          %s860 = sand.u32 %s114, 1
          %s861 = smul.addr %s860, 8
          %s862 = scalar_lea.vmem [#allocation8], %s861
          %863 = dma.done %s859, 128
        $region56: #{tpu_custom_call.1} parent=51 // pred_fallthru
          _
      $region52: #{tpu_custom_call.1} parent=5 // pred_fallthru
        _
    $region6: #{tpu_custom_call.1} parent=1 // loop_footer
      %s20 = sadd.s32 1, %s16
    $region7: #{tpu_custom_call.1} parent=1 // loop_footer_branch
      %15 = sbr.rel target = $region3
    $region8: #{tpu_custom_call.1} parent=1 // loop_exit
      _
    %864 = vsyncpa [#allocation3], 1
    %s865 = scalar_lea.sflag [#allocation3], 1
    %866 = vsyncpa %s865, 1
    %867 = vsyncpa [#allocation6], 1
    %868 = vsyncpa [#allocation4], 1
    %s869 = scalar_lea.sflag [#allocation4], 1
    %870 = vsyncpa %s869, 1

</llo_original>
